<compile_context>
chip_gen: v5e
topology: v5e:2x2
jax: 0.10.0
libtpu: 0.0.40
codegen_flags: <defaults>
</compile_context>

<pallas_src>
import jax
import jax.numpy as jnp
from jax.experimental import pallas as pl
from jax.experimental.pallas import tpu as pltpu

F32 = jnp.float32
BF16 = jnp.bfloat16
VMEM_SPEC = pl.BlockSpec(memory_space=pltpu.MemorySpace.VMEM)


def _round_up(x, m):
    return (x + m - 1) // m * m


# --------------------------- tiled matmul + bias ---------------------------

def _tiled_matmul_bias_kernel(x_ref, w_ref, b_ref, o_ref, acc_ref):
    @pl.when(pl.program_id(2) == 0)
    def _():
        acc_ref[...] = jnp.zeros_like(acc_ref)

    acc_ref[...] += jnp.dot(x_ref[...], w_ref[...],
                            preferred_element_type=jnp.float32)

    @pl.when(pl.program_id(2) == pl.num_programs(2) - 1)
    def _():
        o_ref[...] = (acc_ref[...] + b_ref[...]).astype(o_ref.dtype)


def _pad2d(x, rows, cols, dtype):
    # Fallback only: at the dims used here every operand is already a tile
    # multiple, so no padded activation copy is ever materialized.
    x = x.astype(dtype)
    if x.shape == (rows, cols):
        return x
    return jnp.zeros((rows, cols), dtype).at[:x.shape[0], :x.shape[1]].set(x)


def tiled_matmul_bias(x, w, b, *, tm=256, tn=512, tk=512,
                      cast_bf16=False, out_dtype=F32):
    """(M, K) @ (K, N) + (1, N) with a tiled grid, f32 accumulator scratch and
    parallel/parallel/arbitrary semantics.  Operands optionally bf16 with f32
    accumulation; output dtype selectable so downstream kernels can consume
    bf16 without an extra HBM cast pass."""
    M, K = x.shape
    _, N = w.shape
    tm = min(tm, _round_up(M, 8))
    tk = min(tk, _round_up(K, 128))
    tn = min(tn, _round_up(N, 128))
    Mp = _round_up(M, tm)
    # v7x has 2 TensorCores: if M collapses to a single block, split N into at
    # least 2 lane-dense blocks so both cores get work on the big matmuls.
    if Mp // tm == 1 and _round_up(N, 128) // tn < 2 and N >= 256:
        tn = min(tn, max(128, _round_up(_round_up(N, 128) // 2, 128)))
    Kp, Np = _round_up(K, tk), _round_up(N, tn)

    in_dtype = BF16 if cast_bf16 else F32
    in_bytes = 2 if cast_bf16 else 4
    xp = _pad2d(x, Mp, Kp, in_dtype)
    wp = _pad2d(w, Kp, Np, in_dtype)
    bp = _pad2d(b.reshape(1, N), 1, Np, F32)

    # Explicit per-kernel VMEM budget: double-buffered input/output tiles plus
    # the f32 accumulator, with headroom (keeps pipelining on v5e's 16 MiB
    # scoped default and v7x's 64 MiB physical VMEM).
    out_bytes = jnp.dtype(out_dtype).itemsize
    vmem_limit = int(2 * (2 * (tm * tk + tk * tn) * in_bytes
                          + 2 * 8 * tn * 4
                          + 2 * tm * tn * out_bytes
                          + tm * tn * 4)) + (4 << 20)

    grid = (Mp // tm, Np // tn, Kp // tk)
    out = pl.pallas_call(
        _tiled_matmul_bias_kernel,
        out_shape=jax.ShapeDtypeStruct((Mp, Np), out_dtype),
        grid_spec=pltpu.PrefetchScalarGridSpec(
            num_scalar_prefetch=0,
            grid=grid,
            in_specs=[
                pl.BlockSpec((tm, tk), lambda i, j, k: (i, k)),
                pl.BlockSpec((tk, tn), lambda i, j, k: (k, j)),
                pl.BlockSpec((1, tn), lambda i, j, k: (0, j)),
            ],
            out_specs=pl.BlockSpec((tm, tn), lambda i, j, k: (i, j)),
            scratch_shapes=[pltpu.VMEM((tm, tn), F32)],
        ),
        compiler_params=pltpu.CompilerParams(
            dimension_semantics=("parallel", "parallel", "arbitrary"),
            vmem_limit_bytes=vmem_limit),
    )(xp, wp, bp)
    if (Mp, Np) != (M, N):
        out = out[:M, :N]
    return out


# ------------------------- fused encoder tail kernel -------------------------

def _encoder_fused_kernel(patches_ref, cw_ref, cb_ref, pool_ref,
                          ew_ref, eb_ref, gamma_ref, beta_ref, o_ref):
    # conv as im2col matmul + bias + ReLU
    fmap = jnp.dot(patches_ref[...], cw_ref[...],
                   preferred_element_type=jnp.float32) + cb_ref[...]
    fmap = jnp.maximum(fmap, 0.0)
    # F.avg_pool2d(kernel_size=7) + .view: per-image mean over the 49 spatial
    # positions, expressed as a tiny segment-mean matmul (no sublane relayout).
    pooled = jnp.dot(pool_ref[...], fmap, preferred_element_type=jnp.float32)   # (B, CF)
    # embed Linear + bias.  Dropout(p=0.5) is identity in eval mode.
    emb = jnp.dot(pooled, ew_ref[...],
                  preferred_element_type=jnp.float32) + eb_ref[...]
    # BatchNorm1d (training-mode batch statistics)
    mean = jnp.mean(emb, axis=0, keepdims=True)
    var = jnp.mean(jnp.square(emb - mean), axis=0, keepdims=True)
    o_ref[...] = (emb - mean) * jax.lax.rsqrt(var + 1e-5) * gamma_ref[...] + beta_ref[...]


def im2col_2x2_s2(images):
    # images: (B, C, H, W) NCHW, 2x2 patches, stride 2, no padding
    B, C, H, W = images.shape
    x = images.reshape(B, C, H // 2, 2, W // 2, 2)
    x = x.transpose(0, 2, 4, 1, 3, 5)               # (B, H/2, W/2, C, 2, 2)
    return x.reshape(B * (H // 2) * (W // 2), C * 4)
    # TODO(synk): for the real DenseNet backbone, do NOT keep this single-shot
    # all-in-VMEM path: tile patches over rows with a grid, do the im2col
    # gather as in-kernel strided DMA, and cast conv/embed operands to bf16.


def encoder_forward(params, images):
    B = images.shape[0]
    # TODO(synk): full DenseNet-161 feature extractor; stand-in conv backbone here.
    patches = im2col_2x2_s2(images)                       # (B*49, Cin*4)
    P = patches.shape[0] // B
    CF = params["conv_w"].shape[1]
    E = params["embed_w"].shape[1]
    # segment-mean matrix: pool[b, b*P + p] = 1/P
    pool = jnp.repeat(jnp.eye(B, dtype=F32), P, axis=1) / float(P)   # (B, B*P)
    return pl.pallas_call(
        _encoder_fused_kernel,
        out_shape=jax.ShapeDtypeStruct((B, E), F32),
        in_specs=[VMEM_SPEC] * 8,
        out_specs=VMEM_SPEC,
    )(patches.astype(F32),
      params["conv_w"].astype(F32),
      params["conv_b"].reshape(1, CF).astype(F32),
      pool,
      params["embed_w"].astype(F32),
      params["embed_b"].reshape(1, E).astype(F32),
      params["bn_gamma"].reshape(1, E).astype(F32),
      params["bn_beta"].reshape(1, E).astype(F32))


# ------------------------------ LSTM recurrence ------------------------------

def _lstm_step_kernel(gx_ref, whh_ref, hseq_ref, h_scr, c_scr):
    # One grid step == one timestep.  gx (1,B,4H) streams in and hseq (1,B,H)
    # streams out (auto double-buffered DMA overlapped with compute); W_hh has a
    # constant block index so it is fetched once and stays VMEM-resident; h/c
    # persist in f32 scratch across the whole grid.
    H = whh_ref.shape[0]

    @pl.when(pl.program_id(0) == 0)
    def _():
        h_scr[...] = jnp.zeros_like(h_scr)
        c_scr[...] = jnp.zeros_like(c_scr)

    # Recurrent matmul: bf16 x bf16 -> f32 (halves the W_hh stream per step).
    # TODO(synk): for tiny batch, pin W_hh in MXU weight registers via
    # pltpu.matmul_push_rhs/acc_lhs/pop instead of re-streaming pushes each step.
    gates = gx_ref[0].astype(jnp.float32) + jnp.dot(
        h_scr[...].astype(whh_ref.dtype), whh_ref[...],
        preferred_element_type=jnp.float32)                       # (B, 4H)
    # PyTorch gate order i, f, g, o.  H is a multiple of 128 so every gate slice
    # is a lane-dense slab.  Gate math stays f32 (v5e has no bf16 VPU/EUP).
    i = jax.nn.sigmoid(gates[:, 0 * H:1 * H])
    f = jax.nn.sigmoid(gates[:, 1 * H:2 * H])
    g = jnp.tanh(gates[:, 2 * H:3 * H])
    o = jax.nn.sigmoid(gates[:, 3 * H:4 * H])
    c = f * c_scr[...] + i * g
    h = o * jnp.tanh(c)
    c_scr[...] = c
    h_scr[...] = h
    hseq_ref[0] = h.astype(hseq_ref.dtype)


def lstm_recurrence(gates_x_tb4h, w_hh_t):
    """gates_x_tb4h: (T+1, B, 4H) = x_t @ W_ih + (b_ih + b_hh), bf16, time-major.
    w_hh_t: (H, 4H) bf16.  Returns hseq (T+1, B, H) in bf16 so the vocab
    projection consumes it without another HBM cast pass."""
    Tp1, B, H4 = gates_x_tb4h.shape
    H = w_hh_t.shape[0]
    in_b = jnp.dtype(gates_x_tb4h.dtype).itemsize
    w_b = jnp.dtype(w_hh_t.dtype).itemsize
    # Per-timestep streaming keeps VMEM to a few MB even at real dims
    # (T~20, B~128, H~512) -- safe on v7x's 64 MiB physical VMEM.
    vmem_limit = int(2 * (2 * B * H4 * in_b + 2 * H * H4 * w_b
                          + 2 * B * H * 2 + 2 * B * H * 4)) + (2 << 20)
    return pl.pallas_call(
        _lstm_step_kernel,
        out_shape=jax.ShapeDtypeStruct((Tp1, B, H), BF16),
        grid_spec=pltpu.PrefetchScalarGridSpec(
            num_scalar_prefetch=0,
            grid=(Tp1,),
            in_specs=[
                pl.BlockSpec((1, B, H4), lambda t: (t, 0, 0)),
                pl.BlockSpec((H, H4), lambda t: (0, 0)),
            ],
            out_specs=pl.BlockSpec((1, B, H), lambda t: (t, 0, 0)),
            scratch_shapes=[pltpu.VMEM((B, H), F32),
                            pltpu.VMEM((B, H), F32)],
        ),
        compiler_params=pltpu.CompilerParams(
            dimension_semantics=("arbitrary",),
            vmem_limit_bytes=vmem_limit),
    )(gates_x_tb4h, w_hh_t)


# ------------------------------- glue / model -------------------------------

def decoder_forward(params, features, captions, lengths):
    del lengths  # TODO(synk): pack_padded_sequence — full padded sequence is used.
    emb = jnp.take(params["word_embed"], captions, axis=0)          # (B, T, E) gather (glue)
    seq = jnp.concatenate([features[:, None, :], emb], axis=1)      # (B, T+1, E)
    seq_tbe = jnp.transpose(seq, (1, 0, 2))                         # time-major (T+1, B, E)
    Tp1, B, E = seq_tbe.shape
    H = params["w_hh_t"].shape[0]
    V = params["out_b"].shape[0]

    # Hoisted LSTM input projection: one big bf16 MXU matmul (f32 acc) over all
    # timesteps, combined bias (b_ih + b_hh) folded in.  Output emitted as bf16
    # so the streamed recurrence DMAs half the bytes per timestep.
    gx = tiled_matmul_bias(seq_tbe.reshape(Tp1 * B, E),
                           params["w_ih_t_bf16"], params["lstm_b"],
                           cast_bf16=True, out_dtype=BF16)          # (T+1)*B x 4H bf16
    hseq = lstm_recurrence(gx.reshape(Tp1, B, 4 * H),
                           params["w_hh_t_bf16"])                   # (T+1, B, H) bf16

    # Re-layout the narrow bf16 hidden states (H-wide) to batch-major before the
    # vocab projection, so the wide f32 logits come out already in (B, T+1, V)
    # and never need a transpose pass of their own.
    hbm = jnp.transpose(hseq, (1, 0, 2)).reshape(B * Tp1, H)        # (B*(T+1), H) bf16
    logits = tiled_matmul_bias(hbm, params["out_w_bf16"], params["out_b"],
                               cast_bf16=True)                      # (B*(T+1), V) f32
    return logits.reshape(B, Tp1, V)


def captioner_forward(params, images, captions, lengths):
    features = encoder_forward(params, images)
    return decoder_forward(params, features, captions, lengths)


def init_params(key, cin, cfeat, embed_size, hidden_size, vocab_size):
    ks = jax.random.split(key, 10)
    s = 0.05
    p = {
        # stand-in backbone conv: weight (Cin*kh*kw, Cfeat), bias (Cfeat,)
        "conv_w": s * jax.random.normal(ks[0], (cin * 4, cfeat), F32),
        "conv_b": s * jax.random.normal(ks[1], (cfeat,), F32),
        # encoder embed Linear(cfeat, embed_size)
        "embed_w": s * jax.random.normal(ks[2], (cfeat, embed_size), F32),
        "embed_b": s * jax.random.normal(ks[3], (embed_size,), F32),
        # BatchNorm1d(embed_size)
        "bn_gamma": jnp.ones((embed_size,), F32),
        "bn_beta": jnp.zeros((embed_size,), F32),
        # decoder word embedding (vocab, embed)
        "word_embed": s * jax.random.normal(ks[4], (vocab_size, embed_size), F32),
        # LSTM: W_ih^T (E, 4H), W_hh^T (H, 4H), combined bias (b_ih + b_hh) (4H,)
        "w_ih_t": s * jax.random.normal(ks[5], (embed_size, 4 * hidden_size), F32),
        "w_hh_t": s * jax.random.normal(ks[6], (hidden_size, 4 * hidden_size), F32),
        "lstm_b": s * jax.random.normal(ks[7], (4 * hidden_size,), F32),
        # output Linear(hidden, vocab)
        "out_w": s * jax.random.normal(ks[8], (hidden_size, vocab_size), F32),
        "out_b": s * jax.random.normal(ks[9], (vocab_size,), F32),
    }
    # bf16 weight copies made ONCE at init (MXU-native operands on v5e/v6e/v7x;
    # avoids a per-forward cast pass over the weights).
    p["w_ih_t_bf16"] = p["w_ih_t"].astype(BF16)
    p["w_hh_t_bf16"] = p["w_hh_t"].astype(BF16)
    p["out_w_bf16"] = p["out_w"].astype(BF16)
    return p


if __name__ == "__main__":
    B, CIN, HIMG, WIMG = 8, 3, 14, 14      # stand-in images -> 7x7 feature map
    CFEAT = 256                            # stand-in for densenet161 classifier.in_features (2208)
    # 128-lane-aligned dims; B a multiple of 8 and (T+1)*B a multiple of 8 so no
    # activation padding is ever materialized for the matmul kernels.
    EMBED, HIDDEN, VOCAB, T = 128, 128, 256, 7

    key = jax.random.PRNGKey(0)
    kimg, kcap, kparam = jax.random.split(key, 3)
    images = jax.random.normal(kimg, (B, CIN, HIMG, WIMG), F32)        # NCHW
    captions = jax.random.randint(kcap, (B, T), 0, VOCAB)              # int token ids
    lengths = jnp.array([T + 1, T + 1, T, T, T - 1, T - 1, T - 2, T - 2],
                        dtype=jnp.int32)

    params = init_params(kparam, CIN, CFEAT, EMBED, HIDDEN, VOCAB)

    out = captioner_forward(params, images, captions, lengths)
    out = jax.block_until_ready(out)
    assert out.shape == (B, T + 1, VOCAB), out.shape
    assert bool(jnp.all(jnp.isfinite(out)))
    print("KERNEL_OK")
</pallas_src>

<mosaic_0001>
module attributes {stable_mosaic.version = 11 : i64} {
  func.func @_encoder_fused_kernel(%arg0: memref<392x12xf32, #tpu.memory_space<vmem>>, %arg1: memref<12x256xf32, #tpu.memory_space<vmem>>, %arg2: memref<1x256xf32, #tpu.memory_space<vmem>>, %arg3: memref<8x392xf32, #tpu.memory_space<vmem>>, %arg4: memref<256x128xf32, #tpu.memory_space<vmem>>, %arg5: memref<1x128xf32, #tpu.memory_space<vmem>>, %arg6: memref<1x128xf32, #tpu.memory_space<vmem>>, %arg7: memref<1x128xf32, #tpu.memory_space<vmem>>, %arg8: memref<8x128xf32, #tpu.memory_space<vmem>>) attributes {dimension_semantics = [], scalar_prefetch = 0 : i64, scratch_operands = 0 : i64, tpu.core_type = #tpu.core_type<tc>} {
    %c0 = arith.constant 0 : index
    %c0_0 = arith.constant 0 : index
    %0 = vector.load %arg0[%c0, %c0_0] : memref<392x12xf32, #tpu.memory_space<vmem>>, vector<392x12xf32>
    %c0_1 = arith.constant 0 : index
    %c0_2 = arith.constant 0 : index
    %1 = vector.load %arg1[%c0_1, %c0_2] : memref<12x256xf32, #tpu.memory_space<vmem>>, vector<12x256xf32>
    %cst = arith.constant dense<0.000000e+00> : vector<392x256xf32>
    %2 = tpu.matmul %0, %1, %cst {dimension_numbers = #tpu.dot_dimension_numbers<[1], [0], [0], [1], [0, 0, 1, 1], [], []>} : vector<392x12xf32>, vector<12x256xf32>, vector<392x256xf32> -> vector<392x256xf32>
    %c0_3 = arith.constant 0 : index
    %c0_4 = arith.constant 0 : index
    %3 = vector.load %arg2[%c0_3, %c0_4] : memref<1x256xf32, #tpu.memory_space<vmem>>, vector<1x256xf32>
    %4 = vector.broadcast %3 : vector<1x256xf32> to vector<392x256xf32>
    %5 = arith.addf %2, %4 : vector<392x256xf32>
    %cst_5 = arith.constant 0.000000e+00 : f32
    %6 = vector.broadcast %cst_5 : f32 to vector<392x256xf32>
    %7 = arith.maximumf %5, %6 : vector<392x256xf32>
    %c0_6 = arith.constant 0 : index
    %c0_7 = arith.constant 0 : index
    %8 = vector.load %arg3[%c0_6, %c0_7] : memref<8x392xf32, #tpu.memory_space<vmem>>, vector<8x392xf32>
    %cst_8 = arith.constant dense<0.000000e+00> : vector<8x256xf32>
    %9 = tpu.matmul %8, %7, %cst_8 {dimension_numbers = #tpu.dot_dimension_numbers<[1], [0], [0], [1], [0, 0, 1, 1], [], []>} : vector<8x392xf32>, vector<392x256xf32>, vector<8x256xf32> -> vector<8x256xf32>
    %c0_9 = arith.constant 0 : index
    %c0_10 = arith.constant 0 : index
    %10 = vector.load %arg4[%c0_9, %c0_10] : memref<256x128xf32, #tpu.memory_space<vmem>>, vector<256x128xf32>
    %cst_11 = arith.constant dense<0.000000e+00> : vector<8x128xf32>
    %11 = tpu.matmul %9, %10, %cst_11 {dimension_numbers = #tpu.dot_dimension_numbers<[1], [0], [0], [1], [0, 0, 1, 1], [], []>} : vector<8x256xf32>, vector<256x128xf32>, vector<8x128xf32> -> vector<8x128xf32>
    %c0_12 = arith.constant 0 : index
    %c0_13 = arith.constant 0 : index
    %12 = vector.load %arg5[%c0_12, %c0_13] : memref<1x128xf32, #tpu.memory_space<vmem>>, vector<1x128xf32>
    %13 = vector.broadcast %12 : vector<1x128xf32> to vector<8x128xf32>
    %14 = arith.addf %11, %13 : vector<8x128xf32>
    %cst_14 = arith.constant dense<0.000000e+00> : vector<128xf32>
    %15 = vector.multi_reduction <add>, %14, %cst_14 [0] : vector<8x128xf32> to vector<128xf32>
    %16 = vector.shape_cast %15 : vector<128xf32> to vector<1x128xf32>
    %cst_15 = arith.constant 8.000000e+00 : f32
    %17 = vector.broadcast %cst_15 : f32 to vector<1x128xf32>
    %18 = arith.divf %16, %17 : vector<1x128xf32>
    %19 = vector.broadcast %18 : vector<1x128xf32> to vector<8x128xf32>
    %20 = arith.subf %14, %19 : vector<8x128xf32>
    %21 = arith.mulf %20, %20 : vector<8x128xf32>
    %cst_16 = arith.constant dense<0.000000e+00> : vector<128xf32>
    %22 = vector.multi_reduction <add>, %21, %cst_16 [0] : vector<8x128xf32> to vector<128xf32>
    %23 = vector.shape_cast %22 : vector<128xf32> to vector<1x128xf32>
    %cst_17 = arith.constant 8.000000e+00 : f32
    %24 = vector.broadcast %cst_17 : f32 to vector<1x128xf32>
    %25 = arith.divf %23, %24 : vector<1x128xf32>
    %26 = vector.broadcast %18 : vector<1x128xf32> to vector<8x128xf32>
    %27 = arith.subf %14, %26 : vector<8x128xf32>
    %cst_18 = arith.constant 9.99999974E-6 : f32
    %28 = vector.broadcast %cst_18 : f32 to vector<1x128xf32>
    %29 = arith.addf %25, %28 : vector<1x128xf32>
    %30 = math.rsqrt %29 : vector<1x128xf32>
    %31 = vector.broadcast %30 : vector<1x128xf32> to vector<8x128xf32>
    %32 = arith.mulf %27, %31 : vector<8x128xf32>
    %c0_19 = arith.constant 0 : index
    %c0_20 = arith.constant 0 : index
    %33 = vector.load %arg6[%c0_19, %c0_20] : memref<1x128xf32, #tpu.memory_space<vmem>>, vector<1x128xf32>
    %34 = vector.broadcast %33 : vector<1x128xf32> to vector<8x128xf32>
    %35 = arith.mulf %32, %34 : vector<8x128xf32>
    %c0_21 = arith.constant 0 : index
    %c0_22 = arith.constant 0 : index
    %36 = vector.load %arg7[%c0_21, %c0_22] : memref<1x128xf32, #tpu.memory_space<vmem>>, vector<1x128xf32>
    %37 = vector.broadcast %36 : vector<1x128xf32> to vector<8x128xf32>
    %38 = arith.addf %35, %37 : vector<8x128xf32>
    %c0_23 = arith.constant 0 : index
    %c0_24 = arith.constant 0 : index
    %39 = vector.load %arg8[%c0_23, %c0_24] : memref<8x128xf32, #tpu.memory_space<vmem>>, vector<8x128xf32>
    tpu.vector_store %arg8[%c0_23, %c0_24], %38 {strides = array<i32>} : memref<8x128xf32, #tpu.memory_space<vmem>>, vector<8x128xf32>,
    return
  }
}

</mosaic_0001>

<llo_original>
// kernel: tpu_custom_call.1
$region0: #{tpu_custom_call.1}
  #allocation0 [shape = 'u32[]', space=smem, size = 0x4, offset = 0x4, fixed_abs, tag = 'smem constant byte address 0x4 - core index']
  #allocation1 [shape = 'u32[72,128]{1,0:T(1,128)}', space=vmem, size = 0x9000, scoped, tag = 'internal scratch']
  %s0 = inlined_call_operand.vmem [shape: f32[392,12], index: 0, kind: input, shape index: {}]
  %s1 = inlined_call_operand.vmem [shape: f32[12,256], index: 1, kind: input, shape index: {}]
  %s2 = inlined_call_operand.vmem [shape: f32[1,256], index: 2, kind: input, shape index: {}]
  %s3 = inlined_call_operand.vmem [shape: f32[8,392], index: 3, kind: input, shape index: {}]
  %s4 = inlined_call_operand.vmem [shape: f32[256,128], index: 4, kind: input, shape index: {}]
  %s5 = inlined_call_operand.vmem [shape: f32[1,128], index: 5, kind: input, shape index: {}]
  %s6 = inlined_call_operand.vmem [shape: f32[1,128], index: 6, kind: input, shape index: {}]
  %s7 = inlined_call_operand.vmem [shape: f32[1,128], index: 7, kind: input, shape index: {}]
  %s8 = inlined_call_operand.hbm [shape: f32[8,128], index: 8, kind: output, shape index: {}]
  %s9 = sld [smem:[#allocation0]]
  $region42: #{tpu_custom_call.1} parent=0
    _
  %s11 = ssub.s32 1, %s9
  %s12 = scalar_select 0, %s11, %s9
  $region1: #{tpu_custom_call.1} parent=0
    #allocation2 [shape = 'u8[4096]{0}', space=vmem, size = 0x1000, scoped, tag = 'output window, operand 0, single buffered']
    #allocation3 [shape = 's32[1]{0}', space=sflag, size = 0x4, scoped, tag = 'scoped memory for tpu_custom_call.1']
    %13 = vsyncpa [#allocation3], 0
    // Predicated region
    $region2: #{tpu_custom_call.1} parent=1 // pred_check
      _
    $region3: #{tpu_custom_call.1} parent=1 // pred_check_branch
      %15 = sbr.rel (0) target = $region5
    $region4: #{tpu_custom_call.1} parent=1 // pred_region
      _
    $region5: #{tpu_custom_call.1} parent=1 // pred_fallthru
      _
    // Predicated region
    $region6: #{tpu_custom_call.1} parent=1 // pred_check
      _
    $region7: #{tpu_custom_call.1} parent=1 // pred_check_branch
      %17 = sbr.rel (0) target = $region9
    $region8: #{tpu_custom_call.1} parent=1 // pred_region
      _
    $region9: #{tpu_custom_call.1} parent=1 // pred_fallthru
      _
    // Predicated region
    $region10: #{tpu_custom_call.1} parent=1 // pred_check
      _
    $region11: #{tpu_custom_call.1} parent=1 // pred_check_branch
      %19 = sbr.rel (0) target = $region13
    $region12: #{tpu_custom_call.1} parent=1 // pred_region
      _
    $region13: #{tpu_custom_call.1} parent=1 // pred_fallthru
      _
    // Predicated region
    $region14: #{tpu_custom_call.1} parent=1 // pred_check
      _
    $region15: #{tpu_custom_call.1} parent=1 // pred_check_branch
      %21 = sbr.rel (0) target = $region17
    $region16: #{tpu_custom_call.1} parent=1 // pred_region
      _
    $region17: #{tpu_custom_call.1} parent=1 // pred_fallthru
      _
    // Predicated region
    $region18: #{tpu_custom_call.1} parent=1 // pred_check
      _
    $region19: #{tpu_custom_call.1} parent=1 // pred_check_branch
      %23 = sbr.rel (0) target = $region21
    $region20: #{tpu_custom_call.1} parent=1 // pred_region
      _
    $region21: #{tpu_custom_call.1} parent=1 // pred_fallthru
      _
    // Predicated region
    $region22: #{tpu_custom_call.1} parent=1 // pred_check
      _
    $region23: #{tpu_custom_call.1} parent=1 // pred_check_branch
      %25 = sbr.rel (0) target = $region25
    $region24: #{tpu_custom_call.1} parent=1 // pred_region
      _
    $region25: #{tpu_custom_call.1} parent=1 // pred_fallthru
      _
    // Predicated region
    $region26: #{tpu_custom_call.1} parent=1 // pred_check
      _
    $region27: #{tpu_custom_call.1} parent=1 // pred_check_branch
      %27 = sbr.rel (0) target = $region29
    $region28: #{tpu_custom_call.1} parent=1 // pred_region
      _
    $region29: #{tpu_custom_call.1} parent=1 // pred_fallthru
      _
    // Predicated region
    $region30: #{tpu_custom_call.1} parent=1 // pred_check
      _
    $region31: #{tpu_custom_call.1} parent=1 // pred_check_branch
      %29 = sbr.rel (0) target = $region33
    $region32: #{tpu_custom_call.1} parent=1 // pred_region
      _
    $region33: #{tpu_custom_call.1} parent=1 // pred_fallthru
      _
    %v30 = vld [vmem:[%s0] sm:$0xff]
    %v31 = vld [vmem:[%s0 + $0x8] sm:$0xff]
    %v32 = vld [vmem:[%s0 + $0x10] sm:$0xff]
    %v33 = vld [vmem:[%s0 + $0x18] sm:$0xff]
    %v34 = vld [vmem:[%s0 + $0x20] sm:$0xff]
    %v35 = vld [vmem:[%s0 + $0x28] sm:$0xff]
    %v36 = vld [vmem:[%s0 + $0x30] sm:$0xff]
    %v37 = vld [vmem:[%s0 + $0x38] sm:$0xff]
    %v38 = vld [vmem:[%s0 + $0x40] sm:$0xff]
    %v39 = vld [vmem:[%s0 + $0x48] sm:$0xff]
    %v40 = vld [vmem:[%s0 + $0x50] sm:$0xff]
    %v41 = vld [vmem:[%s0 + $0x58] sm:$0xff]
    %v42 = vld [vmem:[%s0 + $0x60] sm:$0xff]
    %v43 = vld [vmem:[%s0 + $0x68] sm:$0xff]
    %v44 = vld [vmem:[%s0 + $0x70] sm:$0xff]
    %v45 = vld [vmem:[%s0 + $0x78] sm:$0xff]
    %v46 = vld [vmem:[%s0 + $0x80] sm:$0xff]
    %v47 = vld [vmem:[%s0 + $0x88] sm:$0xff]
    %v48 = vld [vmem:[%s0 + $0x90] sm:$0xff]
    %v49 = vld [vmem:[%s0 + $0x98] sm:$0xff]
    %v50 = vld [vmem:[%s0 + $0xa0] sm:$0xff]
    %v51 = vld [vmem:[%s0 + $0xa8] sm:$0xff]
    %v52 = vld [vmem:[%s0 + $0xb0] sm:$0xff]
    %v53 = vld [vmem:[%s0 + $0xb8] sm:$0xff]
    %v54 = vld [vmem:[%s0 + $0xc0] sm:$0xff]
    %v55 = vld [vmem:[%s0 + $0xc8] sm:$0xff]
    %v56 = vld [vmem:[%s0 + $0xd0] sm:$0xff]
    %v57 = vld [vmem:[%s0 + $0xd8] sm:$0xff]
    %v58 = vld [vmem:[%s0 + $0xe0] sm:$0xff]
    %v59 = vld [vmem:[%s0 + $0xe8] sm:$0xff]
    %v60 = vld [vmem:[%s0 + $0xf0] sm:$0xff]
    %v61 = vld [vmem:[%s0 + $0xf8] sm:$0xff]
    %v62 = vld [vmem:[%s0 + $0x100] sm:$0xff]
    %v63 = vld [vmem:[%s0 + $0x108] sm:$0xff]
    %v64 = vld [vmem:[%s0 + $0x110] sm:$0xff]
    %v65 = vld [vmem:[%s0 + $0x118] sm:$0xff]
    %v66 = vld [vmem:[%s0 + $0x120] sm:$0xff]
    %v67 = vld [vmem:[%s0 + $0x128] sm:$0xff]
    %v68 = vld [vmem:[%s0 + $0x130] sm:$0xff]
    %v69 = vld [vmem:[%s0 + $0x138] sm:$0xff]
    %v70 = vld [vmem:[%s0 + $0x140] sm:$0xff]
    %v71 = vld [vmem:[%s0 + $0x148] sm:$0xff]
    %v72 = vld [vmem:[%s0 + $0x150] sm:$0xff]
    %v73 = vld [vmem:[%s0 + $0x158] sm:$0xff]
    %v74 = vld [vmem:[%s0 + $0x160] sm:$0xff]
    %v75 = vld [vmem:[%s0 + $0x168] sm:$0xff]
    %v76 = vld [vmem:[%s0 + $0x170] sm:$0xff]
    %v77 = vld [vmem:[%s0 + $0x178] sm:$0xff]
    %v78 = vld [vmem:[%s0 + $0x180] sm:$0xff]
    %v79 = vld [vmem:[%s1] sm:$0xff]
    %v80 = vld [vmem:[%s1 + $0x8] sm:$0xff]
    %v81 = vld [vmem:[%s1 + $0x10] sm:$0xf]
    %v82 = vld [vmem:[%s1 + $0x18] sm:$0xf]
    %v83 = vld [vmem:[%s2] sm:$0x3]
    %v85 = vperm.slane %v83, 0
    %v86 = vperm.slane %v83, 1
    %vm89 = vcmask 97280
    %v91 = vsel %vm89, %v30, 0
    %v94 = vsel %vm89, %v31, 0
    %v97 = vsel %vm89, %v32, 0
    %v100 = vsel %vm89, %v33, 0
    %v103 = vsel %vm89, %v34, 0
    %v106 = vsel %vm89, %v35, 0
    %v109 = vsel %vm89, %v36, 0
    %v112 = vsel %vm89, %v37, 0
    %v115 = vsel %vm89, %v38, 0
    %v118 = vsel %vm89, %v39, 0
    %v121 = vsel %vm89, %v40, 0
    %v124 = vsel %vm89, %v41, 0
    %v127 = vsel %vm89, %v42, 0
    %v130 = vsel %vm89, %v43, 0
    %v133 = vsel %vm89, %v44, 0
    %v136 = vsel %vm89, %v45, 0
    %v139 = vsel %vm89, %v46, 0
    %v142 = vsel %vm89, %v47, 0
    %v145 = vsel %vm89, %v48, 0
    %v148 = vsel %vm89, %v49, 0
    %v151 = vsel %vm89, %v50, 0
    %v154 = vsel %vm89, %v51, 0
    %v157 = vsel %vm89, %v52, 0
    %v160 = vsel %vm89, %v53, 0
    %v163 = vsel %vm89, %v54, 0
    %v166 = vsel %vm89, %v55, 0
    %v169 = vsel %vm89, %v56, 0
    %v172 = vsel %vm89, %v57, 0
    %v175 = vsel %vm89, %v58, 0
    %v178 = vsel %vm89, %v59, 0
    %v181 = vsel %vm89, %v60, 0
    %v184 = vsel %vm89, %v61, 0
    %v187 = vsel %vm89, %v62, 0
    %v190 = vsel %vm89, %v63, 0
    %v193 = vsel %vm89, %v64, 0
    %v196 = vsel %vm89, %v65, 0
    %v199 = vsel %vm89, %v66, 0
    %v202 = vsel %vm89, %v67, 0
    %v205 = vsel %vm89, %v68, 0
    %v208 = vsel %vm89, %v69, 0
    %v211 = vsel %vm89, %v70, 0
    %v214 = vsel %vm89, %v71, 0
    %v217 = vsel %vm89, %v72, 0
    %v220 = vsel %vm89, %v73, 0
    %v223 = vsel %vm89, %v74, 0
    %v226 = vsel %vm89, %v75, 0
    %v229 = vsel %vm89, %v76, 0
    %v232 = vsel %vm89, %v77, 0
    %v235 = vsel %vm89, %v78, 0
    %vm237 = vcmask 1043456
    %v239 = vsel %vm237, %v81, 0
    %v242 = vsel %vm237, %v82, 0
    %244 = vmatpush.msra.mxu0 0.0
    %245 = vmatpush.msra.mxu0 0.0
    %246 = vmatpush.msra.mxu0 0.0
    %247 = vmatpush.msra.mxu0 0.0
    %248 = vmatpush.msra.mxu0 0.0
    %249 = vmatpush.msra.mxu0 0.0
    %250 = vmatpush.msra.mxu0 0.0
    %251 = vmatpush.msra.mxu0 0.0
    %252 = vmatpush.msra.mxu0 0.0
    %253 = vmatpush.msra.mxu0 0.0
    %254 = vmatpush.msra.mxu0 0.0
    %255 = vmatpush.msra.mxu0 0.0
    %256 = vmatpush.msra.mxu0 0.0
    %257 = vmatpush.msra.mxu0 0.0
    %258 = vmatpush.msra.mxu0 %v239
    %259 = vmatpush.msra.mxu0 %v79
    %260 = vmatmul.f32.gmra.mxu0 %v91
    %v261 = vpop.f32.mrf.mxu0
    %v262 = vadd.f32 %v85, %v261
    %263 = vmatmul.f32.gmra.mxu0 %v94
    %v264 = vpop.f32.mrf.mxu0
    %v265 = vadd.f32 %v85, %v264
    %266 = vmatmul.f32.gmra.mxu0 %v97
    %v267 = vpop.f32.mrf.mxu0
    %v268 = vadd.f32 %v85, %v267
    %269 = vmatmul.f32.gmra.mxu0 %v100
    %v270 = vpop.f32.mrf.mxu0
    %v271 = vadd.f32 %v85, %v270
    %272 = vmatmul.f32.gmra.mxu0 %v103
    %v273 = vpop.f32.mrf.mxu0
    %v274 = vadd.f32 %v85, %v273
    %275 = vmatmul.f32.gmra.mxu0 %v106
    %v276 = vpop.f32.mrf.mxu0
    %v277 = vadd.f32 %v85, %v276
    %278 = vmatmul.f32.gmra.mxu0 %v109
    %v279 = vpop.f32.mrf.mxu0
    %v280 = vadd.f32 %v85, %v279
    %281 = vmatmul.f32.gmra.mxu0 %v112
    %v282 = vpop.f32.mrf.mxu0
    %v283 = vadd.f32 %v85, %v282
    %284 = vmatmul.f32.gmra.mxu0 %v115
    %v285 = vpop.f32.mrf.mxu0
    %v286 = vadd.f32 %v85, %v285
    %287 = vmatmul.f32.gmra.mxu0 %v118
    %v288 = vpop.f32.mrf.mxu0
    %v289 = vadd.f32 %v85, %v288
    %290 = vmatmul.f32.gmra.mxu0 %v121
    %v291 = vpop.f32.mrf.mxu0
    %v292 = vadd.f32 %v85, %v291
    %293 = vmatmul.f32.gmra.mxu0 %v124
    %v294 = vpop.f32.mrf.mxu0
    %v295 = vadd.f32 %v85, %v294
    %296 = vmatmul.f32.gmra.mxu0 %v127
    %v297 = vpop.f32.mrf.mxu0
    %v298 = vadd.f32 %v85, %v297
    %299 = vmatmul.f32.gmra.mxu0 %v130
    %v300 = vpop.f32.mrf.mxu0
    %v301 = vadd.f32 %v85, %v300
    %302 = vmatmul.f32.gmra.mxu0 %v133
    %v303 = vpop.f32.mrf.mxu0
    %v304 = vadd.f32 %v85, %v303
    %305 = vmatmul.f32.gmra.mxu0 %v136
    %v306 = vpop.f32.mrf.mxu0
    %v307 = vadd.f32 %v85, %v306
    %308 = vmatmul.f32.gmra.mxu0 %v139
    %v309 = vpop.f32.mrf.mxu0
    %v310 = vadd.f32 %v85, %v309
    %311 = vmatmul.f32.gmra.mxu0 %v142
    %v312 = vpop.f32.mrf.mxu0
    %v313 = vadd.f32 %v85, %v312
    %314 = vmatmul.f32.gmra.mxu0 %v145
    %v315 = vpop.f32.mrf.mxu0
    %v316 = vadd.f32 %v85, %v315
    %317 = vmatmul.f32.gmra.mxu0 %v148
    %v318 = vpop.f32.mrf.mxu0
    %v319 = vadd.f32 %v85, %v318
    %320 = vmatmul.f32.gmra.mxu0 %v151
    %v321 = vpop.f32.mrf.mxu0
    %v322 = vadd.f32 %v85, %v321
    %323 = vmatmul.f32.gmra.mxu0 %v154
    %v324 = vpop.f32.mrf.mxu0
    %v325 = vadd.f32 %v85, %v324
    %326 = vmatmul.f32.gmra.mxu0 %v157
    %v327 = vpop.f32.mrf.mxu0
    %v328 = vadd.f32 %v85, %v327
    %329 = vmatmul.f32.gmra.mxu0 %v160
    %v330 = vpop.f32.mrf.mxu0
    %v331 = vadd.f32 %v85, %v330
    %332 = vmatmul.f32.gmra.mxu0 %v163
    %v333 = vpop.f32.mrf.mxu0
    %v334 = vadd.f32 %v85, %v333
    %335 = vmatmul.f32.gmra.mxu0 %v166
    %v336 = vpop.f32.mrf.mxu0
    %v337 = vadd.f32 %v85, %v336
    %338 = vmatmul.f32.gmra.mxu0 %v169
    %v339 = vpop.f32.mrf.mxu0
    %v340 = vadd.f32 %v85, %v339
    %341 = vmatmul.f32.gmra.mxu0 %v172
    %v342 = vpop.f32.mrf.mxu0
    %v343 = vadd.f32 %v85, %v342
    %344 = vmatmul.f32.gmra.mxu0 %v175
    %v345 = vpop.f32.mrf.mxu0
    %v346 = vadd.f32 %v85, %v345
    %347 = vmatmul.f32.gmra.mxu0 %v178
    %v348 = vpop.f32.mrf.mxu0
    %v349 = vadd.f32 %v85, %v348
    %350 = vmatmul.f32.gmra.mxu0 %v181
    %v351 = vpop.f32.mrf.mxu0
    %v352 = vadd.f32 %v85, %v351
    %353 = vmatmul.f32.gmra.mxu0 %v184
    %v354 = vpop.f32.mrf.mxu0
    %v355 = vadd.f32 %v85, %v354
    %356 = vmatmul.f32.gmra.mxu0 %v187
    %v357 = vpop.f32.mrf.mxu0
    %v358 = vadd.f32 %v85, %v357
    %359 = vmatmul.f32.gmra.mxu0 %v190
    %v360 = vpop.f32.mrf.mxu0
    %v361 = vadd.f32 %v85, %v360
    %362 = vmatmul.f32.gmra.mxu0 %v193
    %v363 = vpop.f32.mrf.mxu0
    %v364 = vadd.f32 %v85, %v363
    %365 = vmatmul.f32.gmra.mxu0 %v196
    %v366 = vpop.f32.mrf.mxu0
    %v367 = vadd.f32 %v85, %v366
    %368 = vmatmul.f32.gmra.mxu0 %v199
    %v369 = vpop.f32.mrf.mxu0
    %v370 = vadd.f32 %v85, %v369
    %371 = vmatmul.f32.gmra.mxu0 %v202
    %v372 = vpop.f32.mrf.mxu0
    %v373 = vadd.f32 %v85, %v372
    %374 = vmatmul.f32.gmra.mxu0 %v205
    %v375 = vpop.f32.mrf.mxu0
    %v376 = vadd.f32 %v85, %v375
    %377 = vmatmul.f32.gmra.mxu0 %v208
    %v378 = vpop.f32.mrf.mxu0
    %v379 = vadd.f32 %v85, %v378
    %380 = vmatmul.f32.gmra.mxu0 %v211
    %v381 = vpop.f32.mrf.mxu0
    %v382 = vadd.f32 %v85, %v381
    %383 = vmatmul.f32.gmra.mxu0 %v214
    %v384 = vpop.f32.mrf.mxu0
    %v385 = vadd.f32 %v85, %v384
    %386 = vmatmul.f32.gmra.mxu0 %v217
    %v387 = vpop.f32.mrf.mxu0
    %v388 = vadd.f32 %v85, %v387
    %389 = vmatmul.f32.gmra.mxu0 %v220
    %v390 = vpop.f32.mrf.mxu0
    %v391 = vadd.f32 %v85, %v390
    %392 = vmatmul.f32.gmra.mxu0 %v223
    %v393 = vpop.f32.mrf.mxu0
    %v394 = vadd.f32 %v85, %v393
    %395 = vmatmul.f32.gmra.mxu0 %v226
    %v396 = vpop.f32.mrf.mxu0
    %v397 = vadd.f32 %v85, %v396
    %398 = vmatmul.f32.gmra.mxu0 %v229
    %v399 = vpop.f32.mrf.mxu0
    %v400 = vadd.f32 %v85, %v399
    %401 = vmatmul.f32.gmra.mxu0 %v232
    %v402 = vpop.f32.mrf.mxu0
    %v403 = vadd.f32 %v85, %v402
    %404 = vmatmul.f32.gmra.mxu0 %v235
    %v405 = vpop.f32.mrf.mxu0
    %v406 = vadd.f32 %v85, %v405
    %407 = vdwg.mxu0
    %408 = vmatpush.msra.mxu0 0.0
    %409 = vmatpush.msra.mxu0 0.0
    %410 = vmatpush.msra.mxu0 0.0
    %411 = vmatpush.msra.mxu0 0.0
    %412 = vmatpush.msra.mxu0 0.0
    %413 = vmatpush.msra.mxu0 0.0
    %414 = vmatpush.msra.mxu0 0.0
    %415 = vmatpush.msra.mxu0 0.0
    %416 = vmatpush.msra.mxu0 0.0
    %417 = vmatpush.msra.mxu0 0.0
    %418 = vmatpush.msra.mxu0 0.0
    %419 = vmatpush.msra.mxu0 0.0
    %420 = vmatpush.msra.mxu0 0.0
    %421 = vmatpush.msra.mxu0 0.0
    %422 = vmatpush.msra.mxu0 %v242
    %423 = vmatpush.msra.mxu0 %v80
    %424 = vmatmul.f32.gmra.mxu0 %v91
    %v425 = vpop.f32.mrf.mxu0
    %v426 = vadd.f32 %v86, %v425
    %427 = vmatmul.f32.gmra.mxu0 %v94
    %v428 = vpop.f32.mrf.mxu0
    %v429 = vadd.f32 %v86, %v428
    %430 = vmatmul.f32.gmra.mxu0 %v97
    %v431 = vpop.f32.mrf.mxu0
    %v432 = vadd.f32 %v86, %v431
    %433 = vmatmul.f32.gmra.mxu0 %v100
    %v434 = vpop.f32.mrf.mxu0
    %v435 = vadd.f32 %v86, %v434
    %436 = vmatmul.f32.gmra.mxu0 %v103
    %v437 = vpop.f32.mrf.mxu0
    %v438 = vadd.f32 %v86, %v437
    %439 = vmatmul.f32.gmra.mxu0 %v106
    %v440 = vpop.f32.mrf.mxu0
    %v441 = vadd.f32 %v86, %v440
    %442 = vmatmul.f32.gmra.mxu0 %v109
    %v443 = vpop.f32.mrf.mxu0
    %v444 = vadd.f32 %v86, %v443
    %445 = vmatmul.f32.gmra.mxu0 %v112
    %v446 = vpop.f32.mrf.mxu0
    %v447 = vadd.f32 %v86, %v446
    %448 = vmatmul.f32.gmra.mxu0 %v115
    %v449 = vpop.f32.mrf.mxu0
    %v450 = vadd.f32 %v86, %v449
    %451 = vmatmul.f32.gmra.mxu0 %v118
    %v452 = vpop.f32.mrf.mxu0
    %v453 = vadd.f32 %v86, %v452
    %454 = vmatmul.f32.gmra.mxu0 %v121
    %v455 = vpop.f32.mrf.mxu0
    %v456 = vadd.f32 %v86, %v455
    %457 = vmatmul.f32.gmra.mxu0 %v124
    %v458 = vpop.f32.mrf.mxu0
    %v459 = vadd.f32 %v86, %v458
    %460 = vmatmul.f32.gmra.mxu0 %v127
    %v461 = vpop.f32.mrf.mxu0
    %v462 = vadd.f32 %v86, %v461
    %463 = vmatmul.f32.gmra.mxu0 %v130
    %v464 = vpop.f32.mrf.mxu0
    %v465 = vadd.f32 %v86, %v464
    %466 = vmatmul.f32.gmra.mxu0 %v133
    %v467 = vpop.f32.mrf.mxu0
    %v468 = vadd.f32 %v86, %v467
    %469 = vmatmul.f32.gmra.mxu0 %v136
    %v470 = vpop.f32.mrf.mxu0
    %v471 = vadd.f32 %v86, %v470
    %472 = vmatmul.f32.gmra.mxu0 %v139
    %v473 = vpop.f32.mrf.mxu0
    %v474 = vadd.f32 %v86, %v473
    %475 = vmatmul.f32.gmra.mxu0 %v142
    %v476 = vpop.f32.mrf.mxu0
    %v477 = vadd.f32 %v86, %v476
    %478 = vmatmul.f32.gmra.mxu0 %v145
    %v479 = vpop.f32.mrf.mxu0
    %v480 = vadd.f32 %v86, %v479
    %481 = vmatmul.f32.gmra.mxu0 %v148
    %v482 = vpop.f32.mrf.mxu0
    %v483 = vadd.f32 %v86, %v482
    %484 = vmatmul.f32.gmra.mxu0 %v151
    %v485 = vpop.f32.mrf.mxu0
    %v486 = vadd.f32 %v86, %v485
    %487 = vmatmul.f32.gmra.mxu0 %v154
    %v488 = vpop.f32.mrf.mxu0
    %v489 = vadd.f32 %v86, %v488
    %490 = vmatmul.f32.gmra.mxu0 %v157
    %v491 = vpop.f32.mrf.mxu0
    %v492 = vadd.f32 %v86, %v491
    %493 = vmatmul.f32.gmra.mxu0 %v160
    %v494 = vpop.f32.mrf.mxu0
    %v495 = vadd.f32 %v86, %v494
    %496 = vmatmul.f32.gmra.mxu0 %v163
    %v497 = vpop.f32.mrf.mxu0
    %v498 = vadd.f32 %v86, %v497
    %499 = vmatmul.f32.gmra.mxu0 %v166
    %v500 = vpop.f32.mrf.mxu0
    %v501 = vadd.f32 %v86, %v500
    %502 = vmatmul.f32.gmra.mxu0 %v169
    %v503 = vpop.f32.mrf.mxu0
    %v504 = vadd.f32 %v86, %v503
    %505 = vmatmul.f32.gmra.mxu0 %v172
    %v506 = vpop.f32.mrf.mxu0
    %v507 = vadd.f32 %v86, %v506
    %508 = vmatmul.f32.gmra.mxu0 %v175
    %v509 = vpop.f32.mrf.mxu0
    %v510 = vadd.f32 %v86, %v509
    %511 = vmatmul.f32.gmra.mxu0 %v178
    %v512 = vpop.f32.mrf.mxu0
    %v513 = vadd.f32 %v86, %v512
    %514 = vmatmul.f32.gmra.mxu0 %v181
    %v515 = vpop.f32.mrf.mxu0
    %v516 = vadd.f32 %v86, %v515
    %517 = vmatmul.f32.gmra.mxu0 %v184
    %v518 = vpop.f32.mrf.mxu0
    %v519 = vadd.f32 %v86, %v518
    %520 = vmatmul.f32.gmra.mxu0 %v187
    %v521 = vpop.f32.mrf.mxu0
    %v522 = vadd.f32 %v86, %v521
    %523 = vmatmul.f32.gmra.mxu0 %v190
    %v524 = vpop.f32.mrf.mxu0
    %v525 = vadd.f32 %v86, %v524
    %526 = vmatmul.f32.gmra.mxu0 %v193
    %v527 = vpop.f32.mrf.mxu0
    %v528 = vadd.f32 %v86, %v527
    %529 = vmatmul.f32.gmra.mxu0 %v196
    %v530 = vpop.f32.mrf.mxu0
    %v531 = vadd.f32 %v86, %v530
    %532 = vmatmul.f32.gmra.mxu0 %v199
    %v533 = vpop.f32.mrf.mxu0
    %v534 = vadd.f32 %v86, %v533
    %535 = vmatmul.f32.gmra.mxu0 %v202
    %v536 = vpop.f32.mrf.mxu0
    %v537 = vadd.f32 %v86, %v536
    %538 = vmatmul.f32.gmra.mxu0 %v205
    %v539 = vpop.f32.mrf.mxu0
    %v540 = vadd.f32 %v86, %v539
    %541 = vmatmul.f32.gmra.mxu0 %v208
    %v542 = vpop.f32.mrf.mxu0
    %v543 = vadd.f32 %v86, %v542
    %544 = vmatmul.f32.gmra.mxu0 %v211
    %v545 = vpop.f32.mrf.mxu0
    %v546 = vadd.f32 %v86, %v545
    %547 = vmatmul.f32.gmra.mxu0 %v214
    %v548 = vpop.f32.mrf.mxu0
    %v549 = vadd.f32 %v86, %v548
    %550 = vmatmul.f32.gmra.mxu0 %v217
    %v551 = vpop.f32.mrf.mxu0
    %v552 = vadd.f32 %v86, %v551
    %553 = vmatmul.f32.gmra.mxu0 %v220
    %v554 = vpop.f32.mrf.mxu0
    %v555 = vadd.f32 %v86, %v554
    %556 = vmatmul.f32.gmra.mxu0 %v223
    %v557 = vpop.f32.mrf.mxu0
    %v558 = vadd.f32 %v86, %v557
    %559 = vmatmul.f32.gmra.mxu0 %v226
    %v560 = vpop.f32.mrf.mxu0
    %v561 = vadd.f32 %v86, %v560
    %562 = vmatmul.f32.gmra.mxu0 %v229
    %v563 = vpop.f32.mrf.mxu0
    %v564 = vadd.f32 %v86, %v563
    %565 = vmatmul.f32.gmra.mxu0 %v232
    %v566 = vpop.f32.mrf.mxu0
    %v567 = vadd.f32 %v86, %v566
    %568 = vmatmul.f32.gmra.mxu0 %v235
    %v569 = vpop.f32.mrf.mxu0
    %v570 = vadd.f32 %v86, %v569
    %571 = vdwg.mxu0
    %v572 = vmax.f32 %v262, 0.0
    %v573 = vmax.f32 %v426, 0.0
    %v574 = vmax.f32 %v265, 0.0
    %v575 = vmax.f32 %v429, 0.0
    %v576 = vmax.f32 %v268, 0.0
    %v577 = vmax.f32 %v432, 0.0
    %v578 = vmax.f32 %v271, 0.0
    %v579 = vmax.f32 %v435, 0.0
    %v580 = vmax.f32 %v274, 0.0
    %v581 = vmax.f32 %v438, 0.0
    %v582 = vmax.f32 %v277, 0.0
    %v583 = vmax.f32 %v441, 0.0
    %v584 = vmax.f32 %v280, 0.0
    %v585 = vmax.f32 %v444, 0.0
    %v586 = vmax.f32 %v283, 0.0
    %v587 = vmax.f32 %v447, 0.0
    %v588 = vmax.f32 %v286, 0.0
    %v589 = vmax.f32 %v450, 0.0
    %v590 = vmax.f32 %v289, 0.0
    %v591 = vmax.f32 %v453, 0.0
    %v592 = vmax.f32 %v292, 0.0
    %v593 = vmax.f32 %v456, 0.0
    %v594 = vmax.f32 %v295, 0.0
    %v595 = vmax.f32 %v459, 0.0
    %v596 = vmax.f32 %v298, 0.0
    %v597 = vmax.f32 %v462, 0.0
    %v598 = vmax.f32 %v301, 0.0
    %v599 = vmax.f32 %v465, 0.0
    %v600 = vmax.f32 %v304, 0.0
    %v601 = vmax.f32 %v468, 0.0
    %v602 = vmax.f32 %v307, 0.0
    %v603 = vmax.f32 %v471, 0.0
    %v604 = vmax.f32 %v310, 0.0
    %v605 = vmax.f32 %v474, 0.0
    %v606 = vmax.f32 %v313, 0.0
    %v607 = vmax.f32 %v477, 0.0
    %v608 = vmax.f32 %v316, 0.0
    %v609 = vmax.f32 %v480, 0.0
    %v610 = vmax.f32 %v319, 0.0
    %v611 = vmax.f32 %v483, 0.0
    %v612 = vmax.f32 %v322, 0.0
    %v613 = vmax.f32 %v486, 0.0
    %v614 = vmax.f32 %v325, 0.0
    %v615 = vmax.f32 %v489, 0.0
    %v616 = vmax.f32 %v328, 0.0
    %v617 = vmax.f32 %v492, 0.0
    %v618 = vmax.f32 %v331, 0.0
    %v619 = vmax.f32 %v495, 0.0
    %v620 = vmax.f32 %v334, 0.0
    %v621 = vmax.f32 %v498, 0.0
    %v622 = vmax.f32 %v337, 0.0
    %v623 = vmax.f32 %v501, 0.0
    %v624 = vmax.f32 %v340, 0.0
    %v625 = vmax.f32 %v504, 0.0
    %v626 = vmax.f32 %v343, 0.0
    %v627 = vmax.f32 %v507, 0.0
    %v628 = vmax.f32 %v346, 0.0
    %v629 = vmax.f32 %v510, 0.0
    %v630 = vmax.f32 %v349, 0.0
    %v631 = vmax.f32 %v513, 0.0
    %v632 = vmax.f32 %v352, 0.0
    %v633 = vmax.f32 %v516, 0.0
    %v634 = vmax.f32 %v355, 0.0
    %v635 = vmax.f32 %v519, 0.0
    %v636 = vmax.f32 %v358, 0.0
    %v637 = vmax.f32 %v522, 0.0
    %v638 = vmax.f32 %v361, 0.0
    %v639 = vmax.f32 %v525, 0.0
    %v640 = vmax.f32 %v364, 0.0
    %v641 = vmax.f32 %v528, 0.0
    %v642 = vmax.f32 %v367, 0.0
    %v643 = vmax.f32 %v531, 0.0
    %v644 = vmax.f32 %v370, 0.0
    %v645 = vmax.f32 %v534, 0.0
    %v646 = vmax.f32 %v373, 0.0
    %v647 = vmax.f32 %v537, 0.0
    %v648 = vmax.f32 %v376, 0.0
    %v649 = vmax.f32 %v540, 0.0
    %v650 = vmax.f32 %v379, 0.0
    %v651 = vmax.f32 %v543, 0.0
    %v652 = vmax.f32 %v382, 0.0
    %v653 = vmax.f32 %v546, 0.0
    %v654 = vmax.f32 %v385, 0.0
    %v655 = vmax.f32 %v549, 0.0
    %v656 = vmax.f32 %v388, 0.0
    %v657 = vmax.f32 %v552, 0.0
    %v658 = vmax.f32 %v391, 0.0
    %v659 = vmax.f32 %v555, 0.0
    %v660 = vmax.f32 %v394, 0.0
    %v661 = vmax.f32 %v558, 0.0
    %v662 = vmax.f32 %v397, 0.0
    %v663 = vmax.f32 %v561, 0.0
    %v664 = vmax.f32 %v400, 0.0
    %v665 = vmax.f32 %v564, 0.0
    %v666 = vmax.f32 %v403, 0.0
    %v667 = vmax.f32 %v567, 0.0
    %v668 = vmax.f32 %v406, 0.0
    %v669 = vmax.f32 %v570, 0.0
    %v670 = vld [vmem:[%s3] sm:$0xff]
    %v671 = vld [vmem:[%s3 + $0x8] sm:$0xff]
    %v672 = vld [vmem:[%s3 + $0x10] sm:$0xff]
    %v673 = vld [vmem:[%s3 + $0x18] sm:$0xff]
    %vm674 = vcmask 64512
    %v676 = vsel %vm674, %v673, 0
    %678 = vmatpush.msra.mxu0 %v602
    %679 = vmatpush.msra.mxu0 %v600
    %680 = vmatpush.msra.mxu0 %v598
    %681 = vmatpush.msra.mxu0 %v596
    %682 = vmatpush.msra.mxu0 %v594
    %683 = vmatpush.msra.mxu0 %v592
    %684 = vmatpush.msra.mxu0 %v590
    %685 = vmatpush.msra.mxu0 %v588
    %686 = vmatpush.msra.mxu0 %v586
    %687 = vmatpush.msra.mxu0 %v584
    %688 = vmatpush.msra.mxu0 %v582
    %689 = vmatpush.msra.mxu0 %v580
    %690 = vmatpush.msra.mxu0 %v578
    %691 = vmatpush.msra.mxu0 %v576
    %692 = vmatpush.msra.mxu0 %v574
    %693 = vmatpush.msra.mxu0 %v572
    %694 = vmatmul.f32.gmra.mxu0 %v670
    %v695 = vpop.f32.mrf.mxu0
    %v696 = vadd.f32 0.0, %v695
    %697 = vdwg.mxu0
    %698 = vmatpush.msra.mxu0 %v634
    %699 = vmatpush.msra.mxu0 %v632
    %700 = vmatpush.msra.mxu0 %v630
    %701 = vmatpush.msra.mxu0 %v628
    %702 = vmatpush.msra.mxu0 %v626
    %703 = vmatpush.msra.mxu0 %v624
    %704 = vmatpush.msra.mxu0 %v622
    %705 = vmatpush.msra.mxu0 %v620
    %706 = vmatpush.msra.mxu0 %v618
    %707 = vmatpush.msra.mxu0 %v616
    %708 = vmatpush.msra.mxu0 %v614
    %709 = vmatpush.msra.mxu0 %v612
    %710 = vmatpush.msra.mxu0 %v610
    %711 = vmatpush.msra.mxu0 %v608
    %712 = vmatpush.msra.mxu0 %v606
    %713 = vmatpush.msra.mxu0 %v604
    %714 = vmatmul.f32.gmra.mxu0 %v671
    %v715 = vpop.f32.mrf.mxu0
    %v716 = vadd.f32 %v696, %v715
    %717 = vdwg.mxu0
    %718 = vmatpush.msra.mxu0 %v666
    %719 = vmatpush.msra.mxu0 %v664
    %720 = vmatpush.msra.mxu0 %v662
    %721 = vmatpush.msra.mxu0 %v660
    %722 = vmatpush.msra.mxu0 %v658
    %723 = vmatpush.msra.mxu0 %v656
    %724 = vmatpush.msra.mxu0 %v654
    %725 = vmatpush.msra.mxu0 %v652
    %726 = vmatpush.msra.mxu0 %v650
    %727 = vmatpush.msra.mxu0 %v648
    %728 = vmatpush.msra.mxu0 %v646
    %729 = vmatpush.msra.mxu0 %v644
    %730 = vmatpush.msra.mxu0 %v642
    %731 = vmatpush.msra.mxu0 %v640
    %732 = vmatpush.msra.mxu0 %v638
    %733 = vmatpush.msra.mxu0 %v636
    %734 = vmatmul.f32.gmra.mxu0 %v672
    %v735 = vpop.f32.mrf.mxu0
    %v736 = vadd.f32 %v716, %v735
    %737 = vdwg.mxu0
    %738 = vmatpush.msra.mxu0 0.0
    %739 = vmatpush.msra.mxu0 0.0
    %740 = vmatpush.msra.mxu0 0.0
    %741 = vmatpush.msra.mxu0 0.0
    %742 = vmatpush.msra.mxu0 0.0
    %743 = vmatpush.msra.mxu0 0.0
    %744 = vmatpush.msra.mxu0 0.0
    %745 = vmatpush.msra.mxu0 0.0
    %746 = vmatpush.msra.mxu0 0.0
    %747 = vmatpush.msra.mxu0 0.0
    %748 = vmatpush.msra.mxu0 0.0
    %749 = vmatpush.msra.mxu0 0.0
    %750 = vmatpush.msra.mxu0 0.0
    %751 = vmatpush.msra.mxu0 0.0
    %752 = vmatpush.msra.mxu0 0.0
    %753 = vmatpush.msra.mxu0 %v668
    %754 = vmatmul.f32.gmra.mxu0 %v676
    %v755 = vpop.f32.mrf.mxu0
    %v756 = vadd.f32 %v736, %v755
    %757 = vdwg.mxu0
    %758 = vmatpush.msra.mxu0 %v603
    %759 = vmatpush.msra.mxu0 %v601
    %760 = vmatpush.msra.mxu0 %v599
    %761 = vmatpush.msra.mxu0 %v597
    %762 = vmatpush.msra.mxu0 %v595
    %763 = vmatpush.msra.mxu0 %v593
    %764 = vmatpush.msra.mxu0 %v591
    %765 = vmatpush.msra.mxu0 %v589
    %766 = vmatpush.msra.mxu0 %v587
    %767 = vmatpush.msra.mxu0 %v585
    %768 = vmatpush.msra.mxu0 %v583
    %769 = vmatpush.msra.mxu0 %v581
    %770 = vmatpush.msra.mxu0 %v579
    %771 = vmatpush.msra.mxu0 %v577
    %772 = vmatpush.msra.mxu0 %v575
    %773 = vmatpush.msra.mxu0 %v573
    %774 = vmatmul.f32.gmra.mxu0 %v670
    %v775 = vpop.f32.mrf.mxu0
    %v776 = vadd.f32 0.0, %v775
    %777 = vdwg.mxu0
    %778 = vmatpush.msra.mxu0 %v635
    %779 = vmatpush.msra.mxu0 %v633
    %780 = vmatpush.msra.mxu0 %v631
    %781 = vmatpush.msra.mxu0 %v629
    %782 = vmatpush.msra.mxu0 %v627
    %783 = vmatpush.msra.mxu0 %v625
    %784 = vmatpush.msra.mxu0 %v623
    %785 = vmatpush.msra.mxu0 %v621
    %786 = vmatpush.msra.mxu0 %v619
    %787 = vmatpush.msra.mxu0 %v617
    %788 = vmatpush.msra.mxu0 %v615
    %789 = vmatpush.msra.mxu0 %v613
    %790 = vmatpush.msra.mxu0 %v611
    %791 = vmatpush.msra.mxu0 %v609
    %792 = vmatpush.msra.mxu0 %v607
    %793 = vmatpush.msra.mxu0 %v605
    %794 = vmatmul.f32.gmra.mxu0 %v671
    %v795 = vpop.f32.mrf.mxu0
    %v796 = vadd.f32 %v776, %v795
    %797 = vdwg.mxu0
    %798 = vmatpush.msra.mxu0 %v667
    %799 = vmatpush.msra.mxu0 %v665
    %800 = vmatpush.msra.mxu0 %v663
    %801 = vmatpush.msra.mxu0 %v661
    %802 = vmatpush.msra.mxu0 %v659
    %803 = vmatpush.msra.mxu0 %v657
    %804 = vmatpush.msra.mxu0 %v655
    %805 = vmatpush.msra.mxu0 %v653
    %806 = vmatpush.msra.mxu0 %v651
    %807 = vmatpush.msra.mxu0 %v649
    %808 = vmatpush.msra.mxu0 %v647
    %809 = vmatpush.msra.mxu0 %v645
    %810 = vmatpush.msra.mxu0 %v643
    %811 = vmatpush.msra.mxu0 %v641
    %812 = vmatpush.msra.mxu0 %v639
    %813 = vmatpush.msra.mxu0 %v637
    %814 = vmatmul.f32.gmra.mxu0 %v672
    %v815 = vpop.f32.mrf.mxu0
    %v816 = vadd.f32 %v796, %v815
    %817 = vdwg.mxu0
    %818 = vmatpush.msra.mxu0 0.0
    %819 = vmatpush.msra.mxu0 0.0
    %820 = vmatpush.msra.mxu0 0.0
    %821 = vmatpush.msra.mxu0 0.0
    %822 = vmatpush.msra.mxu0 0.0
    %823 = vmatpush.msra.mxu0 0.0
    %824 = vmatpush.msra.mxu0 0.0
    %825 = vmatpush.msra.mxu0 0.0
    %826 = vmatpush.msra.mxu0 0.0
    %827 = vmatpush.msra.mxu0 0.0
    %828 = vmatpush.msra.mxu0 0.0
    %829 = vmatpush.msra.mxu0 0.0
    %830 = vmatpush.msra.mxu0 0.0
    %831 = vmatpush.msra.mxu0 0.0
    %832 = vmatpush.msra.mxu0 0.0
    %833 = vmatpush.msra.mxu0 %v669
    %834 = vmatmul.f32.gmra.mxu0 %v676
    %v835 = vpop.f32.mrf.mxu0
    %v836 = vadd.f32 %v816, %v835
    %837 = vdwg.mxu0
    %v838 = vld [vmem:[%s4] sm:$0xff]
    %v839 = vld [vmem:[%s4 + $0x8] sm:$0xff]
    %v840 = vld [vmem:[%s4 + $0x10] sm:$0xff]
    %v841 = vld [vmem:[%s4 + $0x18] sm:$0xff]
    %v842 = vld [vmem:[%s4 + $0x20] sm:$0xff]
    %v843 = vld [vmem:[%s4 + $0x28] sm:$0xff]
    %v844 = vld [vmem:[%s4 + $0x30] sm:$0xff]
    %v845 = vld [vmem:[%s4 + $0x38] sm:$0xff]
    %v846 = vld [vmem:[%s4 + $0x40] sm:$0xff]
    %v847 = vld [vmem:[%s4 + $0x48] sm:$0xff]
    %v848 = vld [vmem:[%s4 + $0x50] sm:$0xff]
    %v849 = vld [vmem:[%s4 + $0x58] sm:$0xff]
    %v850 = vld [vmem:[%s4 + $0x60] sm:$0xff]
    %v851 = vld [vmem:[%s4 + $0x68] sm:$0xff]
    %v852 = vld [vmem:[%s4 + $0x70] sm:$0xff]
    %v853 = vld [vmem:[%s4 + $0x78] sm:$0xff]
    %v854 = vld [vmem:[%s4 + $0x80] sm:$0xff]
    %v855 = vld [vmem:[%s4 + $0x88] sm:$0xff]
    %v856 = vld [vmem:[%s4 + $0x90] sm:$0xff]
    %v857 = vld [vmem:[%s4 + $0x98] sm:$0xff]
    %v858 = vld [vmem:[%s4 + $0xa0] sm:$0xff]
    %v859 = vld [vmem:[%s4 + $0xa8] sm:$0xff]
    %v860 = vld [vmem:[%s4 + $0xb0] sm:$0xff]
    %v861 = vld [vmem:[%s4 + $0xb8] sm:$0xff]
    %v862 = vld [vmem:[%s4 + $0xc0] sm:$0xff]
    %v863 = vld [vmem:[%s4 + $0xc8] sm:$0xff]
    %v864 = vld [vmem:[%s4 + $0xd0] sm:$0xff]
    %v865 = vld [vmem:[%s4 + $0xd8] sm:$0xff]
    %v866 = vld [vmem:[%s4 + $0xe0] sm:$0xff]
    %v867 = vld [vmem:[%s4 + $0xe8] sm:$0xff]
    %v868 = vld [vmem:[%s4 + $0xf0] sm:$0xff]
    %v869 = vld [vmem:[%s4 + $0xf8] sm:$0xff]
    %v870 = vld [vmem:[%s5] sm:$0x1]
    %v872 = vperm.slane %v870, 0
    %874 = vmatpush.msra.mxu0 %v853
    %875 = vmatpush.msra.mxu0 %v852
    %876 = vmatpush.msra.mxu0 %v851
    %877 = vmatpush.msra.mxu0 %v850
    %878 = vmatpush.msra.mxu0 %v849
    %879 = vmatpush.msra.mxu0 %v848
    %880 = vmatpush.msra.mxu0 %v847
    %881 = vmatpush.msra.mxu0 %v846
    %882 = vmatpush.msra.mxu0 %v845
    %883 = vmatpush.msra.mxu0 %v844
    %884 = vmatpush.msra.mxu0 %v843
    %885 = vmatpush.msra.mxu0 %v842
    %886 = vmatpush.msra.mxu0 %v841
    %887 = vmatpush.msra.mxu0 %v840
    %888 = vmatpush.msra.mxu0 %v839
    %889 = vmatpush.msra.mxu0 %v838
    %890 = vmatmul.f32.gmra.mxu0 %v756
    %v891 = vpop.f32.mrf.mxu0
    %v892 = vadd.f32 %v872, %v891
    %893 = vdwg.mxu0
    %894 = vmatpush.msra.mxu0 %v869
    %895 = vmatpush.msra.mxu0 %v868
    %896 = vmatpush.msra.mxu0 %v867
    %897 = vmatpush.msra.mxu0 %v866
    %898 = vmatpush.msra.mxu0 %v865
    %899 = vmatpush.msra.mxu0 %v864
    %900 = vmatpush.msra.mxu0 %v863
    %901 = vmatpush.msra.mxu0 %v862
    %902 = vmatpush.msra.mxu0 %v861
    %903 = vmatpush.msra.mxu0 %v860
    %904 = vmatpush.msra.mxu0 %v859
    %905 = vmatpush.msra.mxu0 %v858
    %906 = vmatpush.msra.mxu0 %v857
    %907 = vmatpush.msra.mxu0 %v856
    %908 = vmatpush.msra.mxu0 %v855
    %909 = vmatpush.msra.mxu0 %v854
    %910 = vmatmul.f32.gmra.mxu0 %v836
    %v911 = vpop.f32.mrf.mxu0
    %v912 = vadd.f32 %v892, %v911
    %913 = vdwg.mxu0
    %v914 = vrot.slane %v912, 4
    %v915 = vadd.f32 %v912, %v914
    %v916 = vrot.slane %v915, 2
    %v917 = vadd.f32 %v915, %v916
    %v918 = vrot.slane %v917, 1
    %v919 = vadd.f32 %v917, %v918
    %v920 = vrcp.pop 8.0
    %v921 = vmul.f32 8.0, %v920
    %v922 = vsub.f32 1.0, %v921
    %v923 = vmul.f32 %v920, %v922
    %v924 = vadd.f32 %v920, %v923
    %vm925 = vweird.f32 %v920
    %v926 = vsel %vm925, %v920, %v924
    %v927 = vmul.f32 %v919, %v926
    %v928 = vsub.f32 %v912, %v927
    %v929 = vmul.f32 %v928, %v928
    %v930 = vrot.slane %v929, 4
    %v931 = vadd.f32 %v929, %v930
    %v932 = vrot.slane %v931, 2
    %v933 = vadd.f32 %v931, %v932
    %v934 = vrot.slane %v933, 1
    %v935 = vadd.f32 %v933, %v934
    %v936 = vmul.f32 %v935, %v926
    %v937 = vadd.f32 %v936, 1e-05
    %v938 = vrsqrt.pop %v937
    %v939 = vmul.f32 %v938, %v937
    %v940 = vmul.f32 %v939, %v938
    %v941 = vmul.f32 0.5, %v940
    %v942 = vsub.f32 1.5, %v941
    %v943 = vmul.f32 %v938, %v942
    %vm944 = vweird.f32 %v937
    %vm945 = vweird.f32 %v938
    %vm946 = vmor %vm944, %vm945
    %v947 = vsel %vm946, %v938, %v943
    %v948 = vmul.f32 %v928, %v947
    %v949 = vld [vmem:[%s6] sm:$0x1]
    %v951 = vperm.slane %v949, 0
    %v953 = vmul.f32 %v948, %v951
    %v954 = vld [vmem:[%s7] sm:$0x1]
    %v956 = vperm.slane %v954, 0
    %v958 = vadd.f32 %v953, %v956
    %959 = vst [vmem:[#allocation2] sm:$0xff] %v958
    // Predicated region
    $region34: #{tpu_custom_call.1} parent=1 // pred_check
      _
    $region35: #{tpu_custom_call.1} parent=1 // pred_check_branch
      %961 = sbr.rel (0) target = $region37
    $region36: #{tpu_custom_call.1} parent=1 // pred_region
      %963 = vsyncadd [#allocation3], 0
      %s965 = sshll.u32 [#allocation2], 4
      %s966 = int_to_ptr.vmem [resolvable:$true] %s965
      %s967 = sshll.u32 %s8, 4
      %s968 = int_to_ptr.hbm [resolvable:$true] %s967
      %970 = dma.vmem_to_hbm [thread:$0]  %s966, 128, %s968, [#allocation3]
    $region37: #{tpu_custom_call.1} parent=1 // pred_fallthru
      _
    // Predicated region
    $region38: #{tpu_custom_call.1} parent=1 // pred_check
      _
    $region39: #{tpu_custom_call.1} parent=1 // pred_check_branch
      %972 = sbr.rel (0) target = $region41
    $region40: #{tpu_custom_call.1} parent=1 // pred_region
      %974 = dma.done [#allocation3], 128
    $region41: #{tpu_custom_call.1} parent=1 // pred_fallthru
      _
    %975 = vsyncpa [#allocation3], 1

</llo_original>
